<compile_context>
chip_gen: v5e
topology: v5e:2x2
jax: 0.10.0
libtpu: 0.0.40
codegen_flags: <defaults>
</compile_context>

<pallas_src>
import jax
import jax.numpy as jnp
from jax import lax
from jax.experimental import pallas as pl
from jax.experimental.pallas import tpu as pltpu


# ---------------------------------------------------------------------------
# Kernel 1: channel pooling.  x block (1, C, tS) -> [mean; max] block (1, 2, tS)
# ---------------------------------------------------------------------------
def _pool_kernel(x_ref, o_ref):
    x = x_ref[0]                                                  # (C, tS), input dtype
    inv_c = 1.0 / x.shape[0]
    # f32 accumulation for the mean (safe for bf16 inputs); max is exact.
    # Two direct single-sublane stores: no concatenate -> no sublane relayout.
    o_ref[0, 0:1, :] = jnp.sum(x.astype(jnp.float32), axis=0, keepdims=True) * inv_c
    o_ref[0, 1:2, :] = jnp.max(x, axis=0, keepdims=True).astype(jnp.float32)


# ---------------------------------------------------------------------------
# Kernel 3: streaming scale with fused sigmoid.  out = sigmoid(z) * x
#   z_ref: pre-sigmoid conv output block (1, 1, tS), f32; broadcasts over C.
# ---------------------------------------------------------------------------
def _scale_kernel(x_ref, z_ref, o_ref):
    z = z_ref[...]                                                # (1, 1, tS) f32
    gate = (1.0 / (1.0 + jnp.exp(-z))).astype(x_ref.dtype)
    o_ref[...] = x_ref[...] * gate                                # gate broadcasts over C


# ---------------------------------------------------------------------------
# Wrapper helpers
# ---------------------------------------------------------------------------
def _round_up(x, m):
    return ((x + m - 1) // m) * m


def _budget_and_vmem_limit():
    """Generation-aware per-x-block byte budget + scoped VMEM limit."""
    vmem_bytes = 64 * 1024 * 1024                                 # conservative default (v7x)
    try:
        info = pltpu.get_tpu_info()
        vmem_bytes = int(getattr(info, "vmem_capacity_bytes", vmem_bytes))
    except Exception:
        pass
    if vmem_bytes >= 100 * 1024 * 1024:                           # v5e / v6e: 128 MiB VMEM
        return 8 * 1024 * 1024, 56 * 1024 * 1024
    return 4 * 1024 * 1024, 28 * 1024 * 1024                      # v7x: 64 MiB VMEM


def _choose_spatial_tile(S, C, B, itemsize, block_budget):
    """Pick an S-tile (multiple of 128 lanes) sized by a per-block byte budget.

    Prefers a tile that divides S (no masked tail); otherwise the cdiv grid
    handles the ragged last block.  Keeps >= ~4 grid steps so both TensorCores
    (v7x megacore) stay busy even for small B.
    """
    lanes_budget = max(128, (block_budget // max(1, C * itemsize)) // 128 * 128)
    tile = min(lanes_budget, _round_up(S, 128))
    if S % 128 == 0:
        # Largest multiple-of-128 divisor of S within budget -> no masked tail.
        d = S // 128
        for k in range(min(d, lanes_budget // 128), 0, -1):
            if d % k == 0:
                tile = 128 * k
                break
    # Keep enough grid steps for megacore sharding / pipelining.
    while B * pl.cdiv(S, tile) < 4 and tile >= 512:
        tile = (tile // 2 + 127) // 128 * 128
    return tile, pl.cdiv(S, tile)


# ---------------------------------------------------------------------------
# Forward
# ---------------------------------------------------------------------------
def spatial_attention(x, conv_w):
    """SpatialAttention forward.

    x:      (B, C, D, H, W)
    conv_w: (1, 2, K, K, K) -- PyTorch Conv3d weight layout (out, in, kD, kH, kW)
    """
    B, C, D, H, W = x.shape
    K = conv_w.shape[-1]
    assert conv_w.shape == (1, 2, K, K, K), "conv weight must be (1, 2, K, K, K)"
    pad = (K - 1) // 2                       # 'same' padding (3 for K=7, 1 for K=3)

    S = D * H * W
    itemsize = jnp.dtype(x.dtype).itemsize
    block_budget, vmem_limit = _budget_and_vmem_limit()
    tile_s, n_s = _choose_spatial_tile(S, C, B, itemsize, block_budget)

    x_flat = x.reshape(B, C, S)              # contiguous reshape: no HBM copy

    stream_params = pltpu.CompilerParams(
        dimension_semantics=("parallel", "parallel"),
        vmem_limit_bytes=vmem_limit,
    )

    # ---- pass 1: channel mean & max -----------------------------------------
    pooled = pl.pallas_call(
        _pool_kernel,
        out_shape=jax.ShapeDtypeStruct((B, 2, S), jnp.float32),
        grid_spec=pltpu.PrefetchScalarGridSpec(
            num_scalar_prefetch=0,
            grid=(B, n_s),
            in_specs=[pl.BlockSpec((1, C, tile_s), lambda b, s: (b, 0, s))],
            out_specs=pl.BlockSpec((1, 2, tile_s), lambda b, s: (b, 0, s)),
        ),
        compiler_params=stream_params,
        cost_estimate=pl.CostEstimate(
            flops=2 * B * C * S,
            transcendentals=0,
            bytes_accessed=B * C * S * itemsize + B * 2 * S * 4,
        ),
    )(x_flat)

    # ---- pass 2: K^3 conv (2 -> 1) on the tiny pooled map (plain XLA) -------
    # Only ~2/C of x's bytes; XLA's conv avoids the lane-starved (W < 128)
    # layout and the 2*K^3-tap unroll a hand-rolled Pallas conv would need.
    pooled_vol = pooled.reshape(B, 2, D, H, W)
    z = lax.conv_general_dilated(
        pooled_vol, conv_w.astype(jnp.float32),
        window_strides=(1, 1, 1),
        padding=[(pad, pad)] * 3,
        dimension_numbers=("NCDHW", "OIDHW", "NCDHW"),
        precision=lax.Precision.HIGHEST,
    )                                        # (B, 1, D, H, W) f32, pre-sigmoid
    z_flat = z.reshape(B, 1, S)

    # ---- pass 3: streaming out = sigmoid(z) * x ------------------------------
    out_flat = pl.pallas_call(
        _scale_kernel,
        out_shape=jax.ShapeDtypeStruct((B, C, S), x.dtype),
        grid_spec=pltpu.PrefetchScalarGridSpec(
            num_scalar_prefetch=0,
            grid=(B, n_s),
            in_specs=[
                pl.BlockSpec((1, C, tile_s), lambda b, s: (b, 0, s)),
                pl.BlockSpec((1, 1, tile_s), lambda b, s: (b, 0, s)),
            ],
            out_specs=pl.BlockSpec((1, C, tile_s), lambda b, s: (b, 0, s)),
        ),
        compiler_params=stream_params,
        cost_estimate=pl.CostEstimate(
            flops=2 * B * C * S,
            transcendentals=B * S,
            bytes_accessed=2 * B * C * S * itemsize + B * S * 4,
        ),
    )(x_flat, z_flat)

    return out_flat.reshape(B, C, D, H, W)


# ---------------------------------------------------------------------------
# Pure-JAX reference mirroring the PyTorch forward
# ---------------------------------------------------------------------------
def reference_spatial_attention(x, conv_w):
    avg = jnp.mean(x, axis=1, keepdims=True)
    mx = jnp.max(x, axis=1, keepdims=True)
    stacked = jnp.concatenate([avg, mx], axis=1)                  # (B, 2, D, H, W)
    K = conv_w.shape[-1]
    pad = (K - 1) // 2
    conv = lax.conv_general_dilated(
        stacked, conv_w,
        window_strides=(1, 1, 1),
        padding=[(pad, pad)] * 3,
        dimension_numbers=("NCDHW", "OIDHW", "NCDHW"),
        precision=lax.Precision.HIGHEST,
    )
    return jax.nn.sigmoid(conv) * x


if __name__ == "__main__":
    # Small shapes consistent with the module: kernel_size=7 (module default),
    # 2-channel pooled map, flattened spatial size 4*8*32 = 1024 (lane-aligned).
    B, C, D, H, W = 2, 16, 4, 8, 32
    K = 7

    key = jax.random.PRNGKey(0)
    kx, kw = jax.random.split(key)
    x = jax.random.normal(kx, (B, C, D, H, W), dtype=jnp.float32)
    conv_w = jax.random.normal(kw, (1, 2, K, K, K), dtype=jnp.float32) * 0.05

    fwd = jax.jit(spatial_attention)
    out = fwd(x, conv_w)
    jax.block_until_ready(out)

    ref = reference_spatial_attention(x, conv_w)
    assert out.shape == x.shape
    err = float(jnp.max(jnp.abs(out - ref)))
    assert jnp.allclose(out, ref, atol=1e-4, rtol=1e-4), f"max abs err {err}"

    print("KERNEL_OK")
</pallas_src>

<mosaic_0001>
module attributes {stable_mosaic.version = 11 : i64} {
  func.func @_pool_kernel(%arg0: i32, %arg1: i32, %arg2: memref<1x16x512xf32, #tpu.memory_space<vmem>>, %arg3: memref<1x2x512xf32, #tpu.memory_space<vmem>>) attributes {dimension_semantics = [#tpu.dimension_semantics<parallel>, #tpu.dimension_semantics<parallel>], iteration_bounds = array<i64: 2, 2>, scalar_prefetch = 0 : i64, scratch_operands = 0 : i64, tpu.core_type = #tpu.core_type<tc>, window_params = [{transform_indices = @transform_0, window_bounds = array<i64: 1, 16, 512>}, {transform_indices = @transform_1, window_bounds = array<i64: 1, 2, 512>}]} {
    %c0 = arith.constant 0 : index
    %c0_0 = arith.constant 0 : index
    %c0_1 = arith.constant 0 : index
    %0 = vector.load %arg2[%c0, %c0_0, %c0_1] : memref<1x16x512xf32, #tpu.memory_space<vmem>>, vector<1x16x512xf32>
    %1 = vector.shape_cast %0 : vector<1x16x512xf32> to vector<16x512xf32>
    %cst = arith.constant dense<0.000000e+00> : vector<512xf32>
    %2 = vector.multi_reduction <add>, %1, %cst [0] : vector<16x512xf32> to vector<512xf32>
    %3 = vector.shape_cast %2 : vector<512xf32> to vector<1x512xf32>
    %cst_2 = arith.constant 6.250000e-02 : f32
    %4 = vector.broadcast %cst_2 : f32 to vector<1x512xf32>
    %5 = arith.mulf %3, %4 : vector<1x512xf32>
    %c0_3 = arith.constant 0 : index
    %c0_4 = arith.constant 0 : index
    %c0_5 = arith.constant 0 : index
    %6 = vector.load %arg3[%c0_3, %c0_4, %c0_5] : memref<1x2x512xf32, #tpu.memory_space<vmem>>, vector<1x1x512xf32>
    %7 = vector.shape_cast %6 : vector<1x1x512xf32> to vector<1x512xf32>
    %8 = vector.shape_cast %5 : vector<1x512xf32> to vector<1x1x512xf32>
    tpu.vector_store %arg3[%c0_3, %c0_4, %c0_5], %8 {strides = array<i32>} : memref<1x2x512xf32, #tpu.memory_space<vmem>>, vector<1x1x512xf32>,
    %cst_6 = arith.constant dense<0xFF800000> : vector<512xf32>
    %9 = vector.multi_reduction <maximumf>, %1, %cst_6 [0] : vector<16x512xf32> to vector<512xf32>
    %10 = vector.shape_cast %9 : vector<512xf32> to vector<1x512xf32>
    %c0_7 = arith.constant 0 : index
    %c1 = arith.constant 1 : index
    %c0_8 = arith.constant 0 : index
    %11 = vector.load %arg3[%c0_7, %c1, %c0_8] : memref<1x2x512xf32, #tpu.memory_space<vmem>>, vector<1x1x512xf32>
    %12 = vector.shape_cast %11 : vector<1x1x512xf32> to vector<1x512xf32>
    %13 = vector.shape_cast %10 : vector<1x512xf32> to vector<1x1x512xf32>
    tpu.vector_store %arg3[%c0_7, %c1, %c0_8], %13 {strides = array<i32>} : memref<1x2x512xf32, #tpu.memory_space<vmem>>, vector<1x1x512xf32>,
    return
  }
  func.func @transform_0(%arg0: i32, %arg1: i32) -> (i32, i32, i32) {
    %c0_i32 = arith.constant 0 : i32
    %c0_i32_0 = arith.constant 0 : i32
    return %arg0, %c0_i32, %arg1 : i32, i32, i32
  }
  func.func @transform_1(%arg0: i32, %arg1: i32) -> (i32, i32, i32) {
    %c0_i32 = arith.constant 0 : i32
    %c0_i32_0 = arith.constant 0 : i32
    return %arg0, %c0_i32, %arg1 : i32, i32, i32
  }
}

module attributes {stable_mosaic.version = 11 : i64} {
  func.func @_scale_kernel(%arg0: i32, %arg1: i32, %arg2: memref<1x16x512xf32, #tpu.memory_space<vmem>>, %arg3: memref<1x1x512xf32, #tpu.memory_space<vmem>>, %arg4: memref<1x16x512xf32, #tpu.memory_space<vmem>>) attributes {dimension_semantics = [#tpu.dimension_semantics<parallel>, #tpu.dimension_semantics<parallel>], iteration_bounds = array<i64: 2, 2>, scalar_prefetch = 0 : i64, scratch_operands = 0 : i64, tpu.core_type = #tpu.core_type<tc>, window_params = [{transform_indices = @transform_0, window_bounds = array<i64: 1, 16, 512>}, {transform_indices = @transform_1, window_bounds = array<i64: 1, 1, 512>}, {transform_indices = @transform_2, window_bounds = array<i64: 1, 16, 512>}]} {
    %c0 = arith.constant 0 : index
    %c0_0 = arith.constant 0 : index
    %c0_1 = arith.constant 0 : index
    %0 = vector.load %arg3[%c0, %c0_0, %c0_1] : memref<1x1x512xf32, #tpu.memory_space<vmem>>, vector<1x1x512xf32>
    %cst = arith.constant 0.000000e+00 : f32
    %1 = vector.broadcast %cst : f32 to vector<1x1x512xf32>
    %2 = arith.subf %1, %0 : vector<1x1x512xf32>
    %3 = math.exp %2 : vector<1x1x512xf32>
    %cst_2 = arith.constant 1.000000e+00 : f32
    %4 = vector.broadcast %cst_2 : f32 to vector<1x1x512xf32>
    %5 = arith.addf %4, %3 : vector<1x1x512xf32>
    %cst_3 = arith.constant 1.000000e+00 : f32
    %6 = vector.broadcast %cst_3 : f32 to vector<1x1x512xf32>
    %7 = arith.divf %6, %5 : vector<1x1x512xf32>
    %c0_4 = arith.constant 0 : index
    %c0_5 = arith.constant 0 : index
    %c0_6 = arith.constant 0 : index
    %8 = vector.load %arg2[%c0_4, %c0_5, %c0_6] : memref<1x16x512xf32, #tpu.memory_space<vmem>>, vector<1x16x512xf32>
    %9 = vector.broadcast %7 : vector<1x1x512xf32> to vector<1x16x512xf32>
    %10 = arith.mulf %8, %9 : vector<1x16x512xf32>
    %c0_7 = arith.constant 0 : index
    %c0_8 = arith.constant 0 : index
    %c0_9 = arith.constant 0 : index
    %11 = vector.load %arg4[%c0_7, %c0_8, %c0_9] : memref<1x16x512xf32, #tpu.memory_space<vmem>>, vector<1x16x512xf32>
    tpu.vector_store %arg4[%c0_7, %c0_8, %c0_9], %10 {strides = array<i32>} : memref<1x16x512xf32, #tpu.memory_space<vmem>>, vector<1x16x512xf32>,
    return
  }
  func.func @transform_0(%arg0: i32, %arg1: i32) -> (i32, i32, i32) {
    %c0_i32 = arith.constant 0 : i32
    %c0_i32_0 = arith.constant 0 : i32
    return %arg0, %c0_i32, %arg1 : i32, i32, i32
  }
  func.func @transform_1(%arg0: i32, %arg1: i32) -> (i32, i32, i32) {
    %c0_i32 = arith.constant 0 : i32
    %c0_i32_0 = arith.constant 0 : i32
    return %arg0, %c0_i32, %arg1 : i32, i32, i32
  }
  func.func @transform_2(%arg0: i32, %arg1: i32) -> (i32, i32, i32) {
    %c0_i32 = arith.constant 0 : i32
    %c0_i32_0 = arith.constant 0 : i32
    return %arg0, %c0_i32, %arg1 : i32, i32, i32
  }
}

</mosaic_0001>

<llo_original>
// kernel: spatial_attention.2
$region0: #{spatial_attention.2}
  #allocation0 [shape = 'u32[]', space=smem, size = 0x4, offset = 0x4, fixed_abs, tag = 'smem constant byte address 0x4 - core index']
  #allocation1 [shape = 'u32[72,128]{1,0:T(1,128)}', space=vmem, size = 0x9000, scoped, tag = 'internal scratch']
  %s0 = inlined_call_operand.vmem [shape: f32[2,16,1024], index: 0, kind: input, shape index: {}]
  %s1 = inlined_call_operand.vmem [shape: f32[2,2,1024], index: 1, kind: output, shape index: {}]
  %s2 = sld [smem:[#allocation0]]
  $region60: #{spatial_attention.2} parent=0
    _
  %s4 = ssub.s32 1, %s2
  %s5 = scalar_select 0, %s4, %s2
  $region1: #{spatial_attention.2} parent=0
    #allocation2 [shape = 'u8[65536]{0}', space=vmem, size = 0x10000, scoped, tag = 'input window, operand 0']
    loop: start=0, step=1, limit=6
    $region2: #{spatial_attention.2} parent=1 // loop_pre_header
      _
    $region3: #{spatial_attention.2} parent=1 // loop_header
      %s7 = sphi 0, %s11
      %p8 = scmp.ge.s32.totalorder %s7, 6
      %s14 = sphi 0, %s26
      %s15 = sphi 0, %s22
      %s16 = sphi 0, %s14
      %s17 = sphi 0, %s15
      %s18 = sphi 0, %s16
      %s19 = sphi 0, %s17
      %s31 = sphi 0, %s33
      %s34 = sphi 0, %s31
      %s35 = sphi 0, %s34
      %s51 = sphi 0, %s35
      %s59 = sphi 0, %s61
      %s62 = sphi 0, %s59
      %s63 = sphi 0, %s62
      %s79 = sphi 0, %s63
    $region4: #{spatial_attention.2} parent=1 // loop_header_branch
      %10 = sbr.rel (%p8) target = $region8
    $region5: #{spatial_attention.2} parent=1 // loop_body
      %s12 = ssub.s32 %s7, 1
      %s13 = ssub.s32 %s7, 2
      %s20 = sadd.s32 1, %s15
      %p21 = scmp.ge.s32.totalorder %s20, 2
      %s22 = scalar_select %p21, 0, %s20
      %s23 = sadd.s32 1, %s14
      %s24 = scalar_select %p21, %s23, %s14
      %p25 = scmp.ge.s32.totalorder %s24, 2
      %s26 = scalar_select %p25, 0, %s24
      %s27 = ssub.s32 %s14, %s26
      %s28 = ssub.s32 %s15, %s22
      %s29 = sor.u32 %s27, %s28
      %p30 = scmp.eq.s32.totalorder %s29, 0
      %s32 = sadd.s32 %s31, 1
      %s33 = scalar_select %p30, %s31, %s32
      %p36 = pneg %p30
      %p37 = scmp.eq.s32.totalorder %s7, 3
      %p38 = por %p36, %p37
      %p39 = scmp.ne.s32.totalorder %s31, %s34
      %p40 = scmp.eq.s32.totalorder %s7, 0
      %p41 = por %p39, %p40
      %p42 = scmp.ne.s32.totalorder %s31, %s34
      %p43 = scmp.eq.s32.totalorder %s12, 3
      %p44 = por %p42, %p43
      %p45 = scmp.ne.s32.totalorder %s34, %s35
      %p46 = scmp.eq.s32.totalorder %s12, 0
      %p47 = por %p45, %p46
      %p48 = scmp.ne.s32.totalorder %s34, %s35
      %p49 = scmp.eq.s32.totalorder %s13, 3
      %p50 = por %p48, %p49
      %p52 = scmp.ne.s32.totalorder %s35, %s51
      %p53 = scmp.eq.s32.totalorder %s13, 0
      %p54 = por %p52, %p53
      %s55 = ssub.s32 %s14, %s26
      %s56 = ssub.s32 %s15, %s22
      %s57 = sor.u32 %s55, %s56
      %p58 = scmp.eq.s32.totalorder %s57, 0
      %s60 = sadd.s32 %s59, 1
      %s61 = scalar_select %p58, %s59, %s60
      %p64 = pneg %p58
      %p65 = scmp.eq.s32.totalorder %s7, 3
      %p66 = por %p64, %p65
      %p67 = scmp.ne.s32.totalorder %s59, %s62
      %p68 = scmp.eq.s32.totalorder %s7, 0
      %p69 = por %p67, %p68
      %p70 = scmp.ne.s32.totalorder %s59, %s62
      %p71 = scmp.eq.s32.totalorder %s12, 3
      %p72 = por %p70, %p71
      %p73 = scmp.ne.s32.totalorder %s62, %s63
      %p74 = scmp.eq.s32.totalorder %s12, 0
      %p75 = por %p73, %p74
      %p76 = scmp.ne.s32.totalorder %s62, %s63
      %p77 = scmp.eq.s32.totalorder %s13, 3
      %p78 = por %p76, %p77
      %p80 = scmp.ne.s32.totalorder %s63, %s79
      %p81 = scmp.eq.s32.totalorder %s13, 0
      %p82 = por %p80, %p81
      %p83 = scmp.le.s32.totalorder 1, %s7
      %p84 = scmp.lt.s32.totalorder %s7, 5
      %p85 = pnand %p83, %p84
      %p86 = pneg %p85
      // Predicated region
      $region9: #{spatial_attention.2} parent=5 // pred_check
        _
      $region10: #{spatial_attention.2} parent=5 // pred_check_branch
        %88 = sbr.rel (%p85) target = $region12
      $region11: #{spatial_attention.2} parent=5 // pred_region
        %s89 = ssub.s32 %s7, 1
      $region12: #{spatial_attention.2} parent=5 // pred_fallthru
        _
      %p90 = scmp.lt.s32.totalorder %s7, 4
      // Predicated region
      $region13: #{spatial_attention.2} parent=5 // pred_check
        %p91 = pneg %p90
      $region14: #{spatial_attention.2} parent=5 // pred_check_branch
        %93 = sbr.rel (%p91) target = $region16
      $region15: #{spatial_attention.2} parent=5 // pred_region
        // Predicated region
        $region17: #{spatial_attention.2} parent=15 // pred_check
          %p94 = pneg %p41
        $region18: #{spatial_attention.2} parent=15 // pred_check_branch
          %96 = sbr.rel (%p94) target = $region20
        $region19: #{spatial_attention.2} parent=15 // pred_region
          %s97 = sand.u32 %s31, 1
          %s98 = sand.u32 %s31, 1
          %s99 = smul.addr %s98, 64
          %s100 = scalar_lea.vmem [#allocation2], %s99
          %s101 = smul.u32 4, %s15
          %s102 = smul.addr %s14, 16
          %s103 = sadd.s32 %s101, %s102
          %s104 = smul.addr %s103, 8
          %s105 = scalar_lea.vmem %s0, %s104
          // Predicated region
          $region21: #{spatial_attention.2} parent=19 // pred_check
            _
          $region22: #{spatial_attention.2} parent=19 // pred_check_branch
            %107 = sbr.rel (0) target = $region24
          $region23: #{spatial_attention.2} parent=19 // pred_region
            // Predicated region
            $region25: #{spatial_attention.2} parent=23 // pred_check
              _
            $region26: #{spatial_attention.2} parent=23 // pred_check_branch
              %109 = sbr.rel (0) target = $region28
            $region27: #{spatial_attention.2} parent=23 // pred_region
              loop: start=0, step=1, limit=1
              $region29: #{spatial_attention.2} parent=27 // loop_pre_header
                _
              $region30: #{spatial_attention.2} parent=27 // loop_header
                %s111 = sphi 0, %s115
                %p112 = scmp.ge.s32.totalorder %s111, 1
                %s116 = sphi %s105, %s105
                %s117 = sphi %s100, %s100
              $region31: #{spatial_attention.2} parent=27 // loop_header_branch
                %114 = sbr.rel (%p112) target = $region35
              $region32: #{spatial_attention.2} parent=27 // loop_body
                %v118 = vld [vmem:[%s116] sm:$0xff]
                %119 = vst [vmem:[%s117] sm:$0xff] %v118
                %v120 = vld [vmem:[%s116 + $0x8] sm:$0xff]
                %121 = vst [vmem:[%s117 + $0x8] sm:$0xff] %v120
                %v122 = vld [vmem:[%s116 + $0x10] sm:$0xff]
                %123 = vst [vmem:[%s117 + $0x10] sm:$0xff] %v122
                %v124 = vld [vmem:[%s116 + $0x18] sm:$0xff]
                %125 = vst [vmem:[%s117 + $0x18] sm:$0xff] %v124
                %v126 = vld [vmem:[%s116 + $0x40] sm:$0xff]
                %127 = vst [vmem:[%s117 + $0x20] sm:$0xff] %v126
                %v128 = vld [vmem:[%s116 + $0x48] sm:$0xff]
                %129 = vst [vmem:[%s117 + $0x28] sm:$0xff] %v128
                %v130 = vld [vmem:[%s116 + $0x50] sm:$0xff]
                %131 = vst [vmem:[%s117 + $0x30] sm:$0xff] %v130
                %v132 = vld [vmem:[%s116 + $0x58] sm:$0xff]
                %133 = vst [vmem:[%s117 + $0x38] sm:$0xff] %v132
              $region33: #{spatial_attention.2} parent=27 // loop_footer
                %s115 = sadd.s32 1, %s111
              $region34: #{spatial_attention.2} parent=27 // loop_footer_branch
                %110 = sbr.rel target = $region30
              $region35: #{spatial_attention.2} parent=27 // loop_exit
                _
            $region28: #{spatial_attention.2} parent=23 // pred_fallthru
              _
            // Predicated region
            $region36: #{spatial_attention.2} parent=23 // pred_check
              _
            $region37: #{spatial_attention.2} parent=23 // pred_check_branch
              %135 = sbr.rel target = $region39
            $region38: #{spatial_attention.2} parent=23 // pred_region
              _
            $region39: #{spatial_attention.2} parent=23 // pred_fallthru
              _
          $region24: #{spatial_attention.2} parent=19 // pred_fallthru
            _
          %136 = vnop
        $region20: #{spatial_attention.2} parent=15 // pred_fallthru
          _
      $region16: #{spatial_attention.2} parent=5 // pred_fallthru
        _
      %p137 = scmp.le.s32.totalorder 1, %s7
      %p138 = scmp.lt.s32.totalorder %s7, 5
      %p139 = pnand %p137, %p138
      %p140 = pneg %p139
      // Predicated region
      $region40: #{spatial_attention.2} parent=5 // pred_check
        _
      $region41: #{spatial_attention.2} parent=5 // pred_check_branch
        %142 = sbr.rel (%p139) target = $region43
      $region42: #{spatial_attention.2} parent=5 // pred_region
        %s143 = ssub.s32 %s7, 1
        %s144 = sand.u32 %s34, 1
        %s145 = sand.u32 %s34, 1
        %s146 = smul.addr %s145, 64
        %s147 = scalar_lea.vmem [#allocation2], %s146
        // Predicated region
        $region44: #{spatial_attention.2} parent=42 // pred_check
          %p148 = pneg %p47
        $region45: #{spatial_attention.2} parent=42 // pred_check_branch
          %150 = sbr.rel (%p148) target = $region47
        $region46: #{spatial_attention.2} parent=42 // pred_region
          _
        $region47: #{spatial_attention.2} parent=42 // pred_fallthru
          _
        %s151 = sand.u32 %s34, 1
        %s152 = sand.u32 %s34, 1
        %s153 = smul.addr %s152, 64
        %s154 = scalar_lea.vmem [#allocation2], %s153
        %p155 = pneg %p47
        %p156 = pneg %p44
        %p157 = pneg %p75
        %p158 = pneg %p72
        %s159 = smul.u32 4, %s17
        %p160 = scmp.lt.s32.totalorder %s16, 1
        %s161 = scalar_select %p160, %s16, 1
        %p162 = scmp.lt.s32.totalorder %s159, 7
        %s163 = scalar_select %p162, %s159, 7
        %s164 = smul.addr %s161, 8
        %s165 = sadd.s32 %s163, %s164
        %s166 = smul.addr %s165, 2
        %s167 = scalar_lea.vmem %s1, %s166
        %s168 = smul.u32 4, %s17
        %s169 = smul.u32 4, %s17
        %p170 = scmp.lt.s32.totalorder %s16, 1
        %s171 = scalar_select %p170, %s16, 1
        %p172 = scmp.lt.s32.totalorder %s169, 7
        %s173 = scalar_select %p172, %s169, 7
        %s174 = smul.addr %s171, 8
        %s175 = sadd.s32 %s173, %s174
        %s176 = smul.addr %s175, 2
        %s177 = scalar_lea.vmem %s1, %s176
        %s178 = smul.u32 4, %s17
        %v179 = vld [vmem:[%s147] sm:$0xff]
        %v180 = vld [vmem:[%s147 + $0x8] sm:$0xff]
        %v181 = vld [vmem:[%s147 + $0x10] sm:$0xff]
        %v182 = vld [vmem:[%s147 + $0x18] sm:$0xff]
        %v183 = vld [vmem:[%s147 + $0x20] sm:$0xff]
        %v184 = vld [vmem:[%s147 + $0x28] sm:$0xff]
        %v185 = vld [vmem:[%s147 + $0x30] sm:$0xff]
        %v186 = vld [vmem:[%s147 + $0x38] sm:$0xff]
        %v187 = vadd.f32 %v179, %v183
        %v188 = vrot.slane %v187, 4
        %v189 = vadd.f32 %v187, %v188
        %v190 = vrot.slane %v189, 2
        %v191 = vadd.f32 %v189, %v190
        %v192 = vrot.slane %v191, 1
        %v193 = vadd.f32 %v191, %v192
        %v194 = vadd.f32 %v180, %v184
        %v195 = vrot.slane %v194, 4
        %v196 = vadd.f32 %v194, %v195
        %v197 = vrot.slane %v196, 2
        %v198 = vadd.f32 %v196, %v197
        %v199 = vrot.slane %v198, 1
        %v200 = vadd.f32 %v198, %v199
        %v201 = vadd.f32 %v181, %v185
        %v202 = vrot.slane %v201, 4
        %v203 = vadd.f32 %v201, %v202
        %v204 = vrot.slane %v203, 2
        %v205 = vadd.f32 %v203, %v204
        %v206 = vrot.slane %v205, 1
        %v207 = vadd.f32 %v205, %v206
        %v208 = vadd.f32 %v182, %v186
        %v209 = vrot.slane %v208, 4
        %v210 = vadd.f32 %v208, %v209
        %v211 = vrot.slane %v210, 2
        %v212 = vadd.f32 %v210, %v211
        %v213 = vrot.slane %v212, 1
        %v214 = vadd.f32 %v212, %v213
        %v215 = vmul.f32 %v193, 0.0625
        %v216 = vmul.f32 %v200, 0.0625
        %v217 = vmul.f32 %v207, 0.0625
        %v218 = vmul.f32 %v214, 0.0625
        %v223 = vrot.slane %v216, 7
        %v224 = vrot.slane %v217, 6
        %v225 = vrot.slane %v218, 5
        %vm226 = vcmask 1040384
        %v227 = vsel %vm226, %v215, %v223
        %vm228 = vcmask 1042434
        %v229 = vsel %vm228, %v224, %v225
        %vm230 = vcmask 1041408
        %v231 = vsel %vm230, %v227, %v229
        %v233 = vlaneseq
        %vm234 = vcmp.ge.s32.totalorder %v233, 0
        %vm235 = vcmp.lt.s32.totalorder %v233, 512
        %vm236 = vmand %vm234, %vm235
        %237 = vst.msk [vmem:[%s177] ss:$2 sm:$0xf] %vm236, %v231
        %v238 = vmax.f32 %v179, %v183
        %v239 = vrot.slane %v238, 4
        %v240 = vmax.f32 %v238, %v239
        %v241 = vrot.slane %v240, 2
        %v242 = vmax.f32 %v240, %v241
        %v243 = vrot.slane %v242, 1
        %v244 = vmax.f32 %v242, %v243
        %v245 = vmax.f32 %v180, %v184
        %v246 = vrot.slane %v245, 4
        %v247 = vmax.f32 %v245, %v246
        %v248 = vrot.slane %v247, 2
        %v249 = vmax.f32 %v247, %v248
        %v250 = vrot.slane %v249, 1
        %v251 = vmax.f32 %v249, %v250
        %v252 = vmax.f32 %v181, %v185
        %v253 = vrot.slane %v252, 4
        %v254 = vmax.f32 %v252, %v253
        %v255 = vrot.slane %v254, 2
        %v256 = vmax.f32 %v254, %v255
        %v257 = vrot.slane %v256, 1
        %v258 = vmax.f32 %v256, %v257
        %v259 = vmax.f32 %v182, %v186
        %v260 = vrot.slane %v259, 4
        %v261 = vmax.f32 %v259, %v260
        %v262 = vrot.slane %v261, 2
        %v263 = vmax.f32 %v261, %v262
        %v264 = vrot.slane %v263, 1
        %v265 = vmax.f32 %v263, %v264
        %v270 = vrot.slane %v251, 7
        %v271 = vrot.slane %v258, 6
        %v272 = vrot.slane %v265, 5
        %v273 = vsel %vm226, %v244, %v270
        %v274 = vsel %vm228, %v271, %v272
        %v275 = vsel %vm230, %v273, %v274
        %s277 = scalar_lea.vmem %s177, 1
        %278 = vst.msk [vmem:[%s277] ss:$2 sm:$0xf] %vm236, %v275
        %s279 = smul.u32 4, %s17
        %p280 = scmp.lt.s32.totalorder %s16, 1
        %s281 = scalar_select %p280, %s16, 1
        %p282 = scmp.lt.s32.totalorder %s279, 7
        %s283 = scalar_select %p282, %s279, 7
        %s284 = smul.addr %s281, 8
        %s285 = sadd.s32 %s283, %s284
        %s286 = smul.addr %s285, 2
        %s287 = scalar_lea.vmem %s1, %s286
        // Predicated region
        $region48: #{spatial_attention.2} parent=42 // pred_check
          %p288 = pneg %p72
        $region49: #{spatial_attention.2} parent=42 // pred_check_branch
          %290 = sbr.rel (%p288) target = $region51
        $region50: #{spatial_attention.2} parent=42 // pred_region
          %s291 = smul.u32 4, %s17
        $region51: #{spatial_attention.2} parent=42 // pred_fallthru
          _
      $region43: #{spatial_attention.2} parent=5 // pred_fallthru
        _
      %p292 = scmp.le.s32.totalorder 2, %s7
      // Predicated region
      $region52: #{spatial_attention.2} parent=5 // pred_check
        %p293 = pneg %p292
      $region53: #{spatial_attention.2} parent=5 // pred_check_branch
        %295 = sbr.rel (%p293) target = $region55
      $region54: #{spatial_attention.2} parent=5 // pred_region
        %s296 = ssub.s32 %s7, 2
        // Predicated region
        $region56: #{spatial_attention.2} parent=54 // pred_check
          %p297 = pneg %p78
        $region57: #{spatial_attention.2} parent=54 // pred_check_branch
          %299 = sbr.rel (%p297) target = $region59
        $region58: #{spatial_attention.2} parent=54 // pred_region
          %s300 = smul.u32 4, %s19
          %p301 = scmp.lt.s32.totalorder %s18, 1
          %s302 = scalar_select %p301, %s18, 1
          %p303 = scmp.lt.s32.totalorder %s300, 7
          %s304 = scalar_select %p303, %s300, 7
          %s305 = smul.addr %s302, 8
          %s306 = sadd.s32 %s304, %s305
          %s307 = smul.addr %s306, 2
          %s308 = scalar_lea.vmem %s1, %s307
        $region59: #{spatial_attention.2} parent=54 // pred_fallthru
          _
      $region55: #{spatial_attention.2} parent=5 // pred_fallthru
        _
    $region6: #{spatial_attention.2} parent=1 // loop_footer
      %s11 = sadd.s32 1, %s7
    $region7: #{spatial_attention.2} parent=1 // loop_footer_branch
      %6 = sbr.rel target = $region3
    $region8: #{spatial_attention.2} parent=1 // loop_exit
      _

// kernel: spatial_attention.3
$region0: #{spatial_attention.3}
  #allocation0 [shape = 'u32[]', space=smem, size = 0x4, offset = 0x4, fixed_abs, tag = 'smem constant byte address 0x4 - core index']
  #allocation1 [shape = 'u32[72,128]{1,0:T(1,128)}', space=vmem, size = 0x9000, scoped, tag = 'internal scratch']
  %s0 = inlined_call_operand.vmem [shape: f32[2,16,1024], index: 0, kind: input, shape index: {}]
  %s1 = inlined_call_operand.vmem [shape: f32[2,1,1024], index: 1, kind: input, shape index: {}]
  %s2 = inlined_call_operand.vmem [shape: f32[2,16,1024], index: 2, kind: output, shape index: {}]
  %s3 = sld [smem:[#allocation0]]
  $region83: #{spatial_attention.3} parent=0
    _
  %s5 = ssub.s32 1, %s3
  %s6 = scalar_select 0, %s5, %s3
  $region1: #{spatial_attention.3} parent=0
    #allocation2 [shape = 'u8[65536]{0}', space=vmem, size = 0x10000, scoped, tag = 'input window, operand 0']
    #allocation3 [shape = 'u8[65536]{0}', space=vmem, size = 0x10000, scoped, tag = 'output window, operand 0']
    loop: start=0, step=1, limit=6
    $region2: #{spatial_attention.3} parent=1 // loop_pre_header
      _
    $region3: #{spatial_attention.3} parent=1 // loop_header
      %s8 = sphi 0, %s12
      %p9 = scmp.ge.s32.totalorder %s8, 6
      %s15 = sphi 0, %s27
      %s16 = sphi 0, %s23
      %s17 = sphi 0, %s15
      %s18 = sphi 0, %s16
      %s19 = sphi 0, %s17
      %s20 = sphi 0, %s18
      %s32 = sphi 0, %s34
      %s35 = sphi 0, %s32
      %s36 = sphi 0, %s35
      %s52 = sphi 0, %s36
      %s60 = sphi 0, %s62
      %s63 = sphi 0, %s60
      %s64 = sphi 0, %s63
      %s80 = sphi 0, %s64
      %s88 = sphi 0, %s90
      %s91 = sphi 0, %s88
      %s92 = sphi 0, %s91
      %s108 = sphi 0, %s92
    $region4: #{spatial_attention.3} parent=1 // loop_header_branch
      %11 = sbr.rel (%p9) target = $region8
    $region5: #{spatial_attention.3} parent=1 // loop_body
      %s13 = ssub.s32 %s8, 1
      %s14 = ssub.s32 %s8, 2
      %s21 = sadd.s32 1, %s16
      %p22 = scmp.ge.s32.totalorder %s21, 2
      %s23 = scalar_select %p22, 0, %s21
      %s24 = sadd.s32 1, %s15
      %s25 = scalar_select %p22, %s24, %s15
      %p26 = scmp.ge.s32.totalorder %s25, 2
      %s27 = scalar_select %p26, 0, %s25
      %s28 = ssub.s32 %s15, %s27
      %s29 = ssub.s32 %s16, %s23
      %s30 = sor.u32 %s28, %s29
      %p31 = scmp.eq.s32.totalorder %s30, 0
      %s33 = sadd.s32 %s32, 1
      %s34 = scalar_select %p31, %s32, %s33
      %p37 = pneg %p31
      %p38 = scmp.eq.s32.totalorder %s8, 3
      %p39 = por %p37, %p38
      %p40 = scmp.ne.s32.totalorder %s32, %s35
      %p41 = scmp.eq.s32.totalorder %s8, 0
      %p42 = por %p40, %p41
      %p43 = scmp.ne.s32.totalorder %s32, %s35
      %p44 = scmp.eq.s32.totalorder %s13, 3
      %p45 = por %p43, %p44
      %p46 = scmp.ne.s32.totalorder %s35, %s36
      %p47 = scmp.eq.s32.totalorder %s13, 0
      %p48 = por %p46, %p47
      %p49 = scmp.ne.s32.totalorder %s35, %s36
      %p50 = scmp.eq.s32.totalorder %s14, 3
      %p51 = por %p49, %p50
      %p53 = scmp.ne.s32.totalorder %s36, %s52
      %p54 = scmp.eq.s32.totalorder %s14, 0
      %p55 = por %p53, %p54
      %s56 = ssub.s32 %s15, %s27
      %s57 = ssub.s32 %s16, %s23
      %s58 = sor.u32 %s56, %s57
      %p59 = scmp.eq.s32.totalorder %s58, 0
      %s61 = sadd.s32 %s60, 1
      %s62 = scalar_select %p59, %s60, %s61
      %p65 = pneg %p59
      %p66 = scmp.eq.s32.totalorder %s8, 3
      %p67 = por %p65, %p66
      %p68 = scmp.ne.s32.totalorder %s60, %s63
      %p69 = scmp.eq.s32.totalorder %s8, 0
      %p70 = por %p68, %p69
      %p71 = scmp.ne.s32.totalorder %s60, %s63
      %p72 = scmp.eq.s32.totalorder %s13, 3
      %p73 = por %p71, %p72
      %p74 = scmp.ne.s32.totalorder %s63, %s64
      %p75 = scmp.eq.s32.totalorder %s13, 0
      %p76 = por %p74, %p75
      %p77 = scmp.ne.s32.totalorder %s63, %s64
      %p78 = scmp.eq.s32.totalorder %s14, 3
      %p79 = por %p77, %p78
      %p81 = scmp.ne.s32.totalorder %s64, %s80
      %p82 = scmp.eq.s32.totalorder %s14, 0
      %p83 = por %p81, %p82
      %s84 = ssub.s32 %s15, %s27
      %s85 = ssub.s32 %s16, %s23
      %s86 = sor.u32 %s84, %s85
      %p87 = scmp.eq.s32.totalorder %s86, 0
      %s89 = sadd.s32 %s88, 1
      %s90 = scalar_select %p87, %s88, %s89
      %p93 = pneg %p87
      %p94 = scmp.eq.s32.totalorder %s8, 3
      %p95 = por %p93, %p94
      %p96 = scmp.ne.s32.totalorder %s88, %s91
      %p97 = scmp.eq.s32.totalorder %s8, 0
      %p98 = por %p96, %p97
      %p99 = scmp.ne.s32.totalorder %s88, %s91
      %p100 = scmp.eq.s32.totalorder %s13, 3
      %p101 = por %p99, %p100
      %p102 = scmp.ne.s32.totalorder %s91, %s92
      %p103 = scmp.eq.s32.totalorder %s13, 0
      %p104 = por %p102, %p103
      %p105 = scmp.ne.s32.totalorder %s91, %s92
      %p106 = scmp.eq.s32.totalorder %s14, 3
      %p107 = por %p105, %p106
      %p109 = scmp.ne.s32.totalorder %s92, %s108
      %p110 = scmp.eq.s32.totalorder %s14, 0
      %p111 = por %p109, %p110
      %p112 = scmp.le.s32.totalorder 1, %s8
      %p113 = scmp.lt.s32.totalorder %s8, 5
      %p114 = pnand %p112, %p113
      %p115 = pneg %p114
      // Predicated region
      $region9: #{spatial_attention.3} parent=5 // pred_check
        _
      $region10: #{spatial_attention.3} parent=5 // pred_check_branch
        %117 = sbr.rel (%p114) target = $region12
      $region11: #{spatial_attention.3} parent=5 // pred_region
        %s118 = ssub.s32 %s8, 1
      $region12: #{spatial_attention.3} parent=5 // pred_fallthru
        _
      %p119 = scmp.lt.s32.totalorder %s8, 4
      // Predicated region
      $region13: #{spatial_attention.3} parent=5 // pred_check
        %p120 = pneg %p119
      $region14: #{spatial_attention.3} parent=5 // pred_check_branch
        %122 = sbr.rel (%p120) target = $region16
      $region15: #{spatial_attention.3} parent=5 // pred_region
        // Predicated region
        $region17: #{spatial_attention.3} parent=15 // pred_check
          %p123 = pneg %p42
        $region18: #{spatial_attention.3} parent=15 // pred_check_branch
          %125 = sbr.rel (%p123) target = $region20
        $region19: #{spatial_attention.3} parent=15 // pred_region
          %s126 = sand.u32 %s32, 1
          %s127 = sand.u32 %s32, 1
          %s128 = smul.addr %s127, 64
          %s129 = scalar_lea.vmem [#allocation2], %s128
          %s130 = smul.u32 4, %s16
          %s131 = smul.addr %s15, 16
          %s132 = sadd.s32 %s130, %s131
          %s133 = smul.addr %s132, 8
          %s134 = scalar_lea.vmem %s0, %s133
          // Predicated region
          $region21: #{spatial_attention.3} parent=19 // pred_check
            _
          $region22: #{spatial_attention.3} parent=19 // pred_check_branch
            %136 = sbr.rel (0) target = $region24
          $region23: #{spatial_attention.3} parent=19 // pred_region
            // Predicated region
            $region25: #{spatial_attention.3} parent=23 // pred_check
              _
            $region26: #{spatial_attention.3} parent=23 // pred_check_branch
              %138 = sbr.rel (0) target = $region28
            $region27: #{spatial_attention.3} parent=23 // pred_region
              loop: start=0, step=1, limit=1
              $region29: #{spatial_attention.3} parent=27 // loop_pre_header
                _
              $region30: #{spatial_attention.3} parent=27 // loop_header
                %s140 = sphi 0, %s144
                %p141 = scmp.ge.s32.totalorder %s140, 1
                %s145 = sphi %s134, %s134
                %s146 = sphi %s129, %s129
              $region31: #{spatial_attention.3} parent=27 // loop_header_branch
                %143 = sbr.rel (%p141) target = $region35
              $region32: #{spatial_attention.3} parent=27 // loop_body
                %v147 = vld [vmem:[%s145] sm:$0xff]
                %148 = vst [vmem:[%s146] sm:$0xff] %v147
                %v149 = vld [vmem:[%s145 + $0x8] sm:$0xff]
                %150 = vst [vmem:[%s146 + $0x8] sm:$0xff] %v149
                %v151 = vld [vmem:[%s145 + $0x10] sm:$0xff]
                %152 = vst [vmem:[%s146 + $0x10] sm:$0xff] %v151
                %v153 = vld [vmem:[%s145 + $0x18] sm:$0xff]
                %154 = vst [vmem:[%s146 + $0x18] sm:$0xff] %v153
                %v155 = vld [vmem:[%s145 + $0x40] sm:$0xff]
                %156 = vst [vmem:[%s146 + $0x20] sm:$0xff] %v155
                %v157 = vld [vmem:[%s145 + $0x48] sm:$0xff]
                %158 = vst [vmem:[%s146 + $0x28] sm:$0xff] %v157
                %v159 = vld [vmem:[%s145 + $0x50] sm:$0xff]
                %160 = vst [vmem:[%s146 + $0x30] sm:$0xff] %v159
                %v161 = vld [vmem:[%s145 + $0x58] sm:$0xff]
                %162 = vst [vmem:[%s146 + $0x38] sm:$0xff] %v161
              $region33: #{spatial_attention.3} parent=27 // loop_footer
                %s144 = sadd.s32 1, %s140
              $region34: #{spatial_attention.3} parent=27 // loop_footer_branch
                %139 = sbr.rel target = $region30
              $region35: #{spatial_attention.3} parent=27 // loop_exit
                _
            $region28: #{spatial_attention.3} parent=23 // pred_fallthru
              _
            // Predicated region
            $region36: #{spatial_attention.3} parent=23 // pred_check
              _
            $region37: #{spatial_attention.3} parent=23 // pred_check_branch
              %164 = sbr.rel target = $region39
            $region38: #{spatial_attention.3} parent=23 // pred_region
              _
            $region39: #{spatial_attention.3} parent=23 // pred_fallthru
              _
          $region24: #{spatial_attention.3} parent=19 // pred_fallthru
            _
          %165 = vnop
        $region20: #{spatial_attention.3} parent=15 // pred_fallthru
          _
        // Predicated region
        $region40: #{spatial_attention.3} parent=15 // pred_check
          %p166 = pneg %p70
        $region41: #{spatial_attention.3} parent=15 // pred_check_branch
          %168 = sbr.rel (%p166) target = $region43
        $region42: #{spatial_attention.3} parent=15 // pred_region
          %s169 = smul.u32 4, %s16
          %p170 = scmp.lt.s32.totalorder %s15, 1
          %s171 = scalar_select %p170, %s15, 1
          %p172 = scmp.lt.s32.totalorder %s169, 7
          %s173 = scalar_select %p172, %s169, 7
          %s174 = smul.addr %s171, 8
          %s175 = sadd.s32 %s173, %s174
          %s176 = scalar_lea.vmem %s1, %s175
          %s177 = smul.u32 4, %s16
        $region43: #{spatial_attention.3} parent=15 // pred_fallthru
          _
      $region16: #{spatial_attention.3} parent=5 // pred_fallthru
        _
      %p178 = scmp.le.s32.totalorder 1, %s8
      %p179 = scmp.lt.s32.totalorder %s8, 5
      %p180 = pnand %p178, %p179
      %p181 = pneg %p180
      // Predicated region
      $region44: #{spatial_attention.3} parent=5 // pred_check
        _
      $region45: #{spatial_attention.3} parent=5 // pred_check_branch
        %183 = sbr.rel (%p180) target = $region47
      $region46: #{spatial_attention.3} parent=5 // pred_region
        %s184 = ssub.s32 %s8, 1
        %s185 = sand.u32 %s35, 1
        %s186 = sand.u32 %s35, 1
        %s187 = smul.addr %s186, 64
        %s188 = scalar_lea.vmem [#allocation2], %s187
        // Predicated region
        $region48: #{spatial_attention.3} parent=46 // pred_check
          %p189 = pneg %p48
        $region49: #{spatial_attention.3} parent=46 // pred_check_branch
          %191 = sbr.rel (%p189) target = $region51
        $region50: #{spatial_attention.3} parent=46 // pred_region
          _
        $region51: #{spatial_attention.3} parent=46 // pred_fallthru
          _
        %s192 = sand.u32 %s35, 1
        %s193 = sand.u32 %s35, 1
        %s194 = smul.addr %s193, 64
        %s195 = scalar_lea.vmem [#allocation2], %s194
        %p196 = pneg %p48
        %p197 = pneg %p45
        %s198 = smul.u32 4, %s18
        %p199 = scmp.lt.s32.totalorder %s17, 1
        %s200 = scalar_select %p199, %s17, 1
        %p201 = scmp.lt.s32.totalorder %s198, 7
        %s202 = scalar_select %p201, %s198, 7
        %s203 = smul.addr %s200, 8
        %s204 = sadd.s32 %s202, %s203
        %s205 = scalar_lea.vmem %s1, %s204
        %p206 = pneg %p76
        %p207 = pneg %p73
        %p208 = pneg %p104
        %p209 = pneg %p101
        %s210 = sand.u32 %s91, 1
        %s211 = sand.u32 %s91, 1
        %s212 = smul.addr %s211, 64
        %s213 = scalar_lea.vmem [#allocation3], %s212
        %s214 = smul.u32 4, %s18
        %s215 = smul.u32 4, %s18
        %p216 = scmp.lt.s32.totalorder %s17, 1
        %s217 = scalar_select %p216, %s17, 1
        %p218 = scmp.lt.s32.totalorder %s215, 7
        %s219 = scalar_select %p218, %s215, 7
        %s220 = smul.addr %s217, 8
        %s221 = sadd.s32 %s219, %s220
        %s222 = scalar_lea.vmem %s1, %s221
        %s223 = smul.u32 4, %s18
        %s224 = smul.u32 4, %s18
        %v225 = vld [vmem:[%s222] sm:$0xf]
        %v226 = vsub.f32 0.0, %v225
        %v227 = vmul.f32 %v226, 1.442695
        %v228 = vpow.pop %v227
        %v229 = vadd.f32 %v228, 1.0
        %v230 = vrcp.pop %v229
        %v231 = vmul.f32 %v229, %v230
        %v232 = vsub.f32 1.0, %v231
        %v233 = vmul.f32 %v230, %v232
        %v234 = vadd.f32 %v230, %v233
        %vm235 = vweird.f32 %v229
        %vm236 = vweird.f32 %v230
        %vm237 = vmor %vm235, %vm236
        %v238 = vsel %vm237, %v230, %v234
        %v239 = vand.u32 2147483647, %v229
        %vm240 = vcmp.eq.f32.partialorder %v239, 8.507059e+37
        %v241 = vand.u32 %v229, 2147483648
        %v242 = vor.u32 1.1754944e-38, %v241
        %v243 = vsel %vm240, %v242, %v238
        %v244 = vmul.f32 1.0, %v243
        %v245 = vld [vmem:[%s188] sm:$0xff]
        %v246 = vld [vmem:[%s188 + $0x8] sm:$0xff]
        %v247 = vld [vmem:[%s188 + $0x10] sm:$0xff]
        %v248 = vld [vmem:[%s188 + $0x18] sm:$0xff]
        %v249 = vld [vmem:[%s188 + $0x20] sm:$0xff]
        %v250 = vld [vmem:[%s188 + $0x28] sm:$0xff]
        %v251 = vld [vmem:[%s188 + $0x30] sm:$0xff]
        %v252 = vld [vmem:[%s188 + $0x38] sm:$0xff]
        %v254 = vperm.slane %v244, 0
        %v255 = vperm.slane %v244, 1
        %v256 = vperm.slane %v244, 2
        %v257 = vperm.slane %v244, 3
        %v262 = vmul.f32 %v245, %v254
        %v263 = vmul.f32 %v246, %v255
        %v264 = vmul.f32 %v247, %v256
        %v265 = vmul.f32 %v248, %v257
        %v266 = vmul.f32 %v249, %v254
        %v267 = vmul.f32 %v250, %v255
        %v268 = vmul.f32 %v251, %v256
        %v269 = vmul.f32 %v252, %v257
        %270 = vst [vmem:[%s213] sm:$0xff] %v262
        %271 = vst [vmem:[%s213 + $0x8] sm:$0xff] %v263
        %272 = vst [vmem:[%s213 + $0x10] sm:$0xff] %v264
        %273 = vst [vmem:[%s213 + $0x18] sm:$0xff] %v265
        %274 = vst [vmem:[%s213 + $0x20] sm:$0xff] %v266
        %275 = vst [vmem:[%s213 + $0x28] sm:$0xff] %v267
        %276 = vst [vmem:[%s213 + $0x30] sm:$0xff] %v268
        %277 = vst [vmem:[%s213 + $0x38] sm:$0xff] %v269
        %s278 = sand.u32 %s91, 1
        %s279 = sand.u32 %s91, 1
        %s280 = smul.addr %s279, 64
        %s281 = scalar_lea.vmem [#allocation3], %s280
        // Predicated region
        $region52: #{spatial_attention.3} parent=46 // pred_check
          %p282 = pneg %p101
        $region53: #{spatial_attention.3} parent=46 // pred_check_branch
          %284 = sbr.rel (%p282) target = $region55
        $region54: #{spatial_attention.3} parent=46 // pred_region
          %s285 = smul.u32 4, %s18
          %s286 = smul.addr %s17, 16
          %s287 = sadd.s32 %s285, %s286
          %s288 = smul.addr %s287, 8
          %s289 = scalar_lea.vmem %s2, %s288
          // Predicated region
          $region56: #{spatial_attention.3} parent=54 // pred_check
            _
          $region57: #{spatial_attention.3} parent=54 // pred_check_branch
            %291 = sbr.rel (0) target = $region59
          $region58: #{spatial_attention.3} parent=54 // pred_region
            // Predicated region
            $region60: #{spatial_attention.3} parent=58 // pred_check
              _
            $region61: #{spatial_attention.3} parent=58 // pred_check_branch
              %293 = sbr.rel (0) target = $region63
            $region62: #{spatial_attention.3} parent=58 // pred_region
              loop: start=0, step=1, limit=1
              $region64: #{spatial_attention.3} parent=62 // loop_pre_header
                _
              $region65: #{spatial_attention.3} parent=62 // loop_header
                %s295 = sphi 0, %s299
                %p296 = scmp.ge.s32.totalorder %s295, 1
                %s300 = sphi %s281, %s281
                %s301 = sphi %s289, %s289
              $region66: #{spatial_attention.3} parent=62 // loop_header_branch
                %298 = sbr.rel (%p296) target = $region70
              $region67: #{spatial_attention.3} parent=62 // loop_body
                %v302 = vld [vmem:[%s300] sm:$0xff]
                %303 = vst [vmem:[%s301] sm:$0xff] %v302
                %v304 = vld [vmem:[%s300 + $0x8] sm:$0xff]
                %305 = vst [vmem:[%s301 + $0x8] sm:$0xff] %v304
                %v306 = vld [vmem:[%s300 + $0x10] sm:$0xff]
                %307 = vst [vmem:[%s301 + $0x10] sm:$0xff] %v306
                %v308 = vld [vmem:[%s300 + $0x18] sm:$0xff]
                %309 = vst [vmem:[%s301 + $0x18] sm:$0xff] %v308
                %v310 = vld [vmem:[%s300 + $0x20] sm:$0xff]
                %311 = vst [vmem:[%s301 + $0x40] sm:$0xff] %v310
                %v312 = vld [vmem:[%s300 + $0x28] sm:$0xff]
                %313 = vst [vmem:[%s301 + $0x48] sm:$0xff] %v312
                %v314 = vld [vmem:[%s300 + $0x30] sm:$0xff]
                %315 = vst [vmem:[%s301 + $0x50] sm:$0xff] %v314
                %v316 = vld [vmem:[%s300 + $0x38] sm:$0xff]
                %317 = vst [vmem:[%s301 + $0x58] sm:$0xff] %v316
              $region68: #{spatial_attention.3} parent=62 // loop_footer
                %s299 = sadd.s32 1, %s295
              $region69: #{spatial_attention.3} parent=62 // loop_footer_branch
                %294 = sbr.rel target = $region65
              $region70: #{spatial_attention.3} parent=62 // loop_exit
                _
            $region63: #{spatial_attention.3} parent=58 // pred_fallthru
              _
            // Predicated region
            $region71: #{spatial_attention.3} parent=58 // pred_check
              _
            $region72: #{spatial_attention.3} parent=58 // pred_check_branch
              %319 = sbr.rel target = $region74
            $region73: #{spatial_attention.3} parent=58 // pred_region
              _
            $region74: #{spatial_attention.3} parent=58 // pred_fallthru
              _
          $region59: #{spatial_attention.3} parent=54 // pred_fallthru
            _
          %320 = vnop
        $region55: #{spatial_attention.3} parent=46 // pred_fallthru
          _
      $region47: #{spatial_attention.3} parent=5 // pred_fallthru
        _
      %p321 = scmp.le.s32.totalorder 2, %s8
      // Predicated region
      $region75: #{spatial_attention.3} parent=5 // pred_check
        %p322 = pneg %p321
      $region76: #{spatial_attention.3} parent=5 // pred_check_branch
        %324 = sbr.rel (%p322) target = $region78
      $region77: #{spatial_attention.3} parent=5 // pred_region
        %s325 = ssub.s32 %s8, 2
        // Predicated region
        $region79: #{spatial_attention.3} parent=77 // pred_check
          %p326 = pneg %p107
        $region80: #{spatial_attention.3} parent=77 // pred_check_branch
          %328 = sbr.rel (%p326) target = $region82
        $region81: #{spatial_attention.3} parent=77 // pred_region
          %s329 = sand.u32 %s92, 1
          %s330 = sand.u32 %s92, 1
          %s331 = smul.addr %s330, 64
          %s332 = scalar_lea.vmem [#allocation3], %s331
        $region82: #{spatial_attention.3} parent=77 // pred_fallthru
          _
      $region78: #{spatial_attention.3} parent=5 // pred_fallthru
        _
    $region6: #{spatial_attention.3} parent=1 // loop_footer
      %s12 = sadd.s32 1, %s8
    $region7: #{spatial_attention.3} parent=1 // loop_footer_branch
      %7 = sbr.rel target = $region3
    $region8: #{spatial_attention.3} parent=1 // loop_exit
      _

</llo_original>
